<compile_context>
chip_gen: v7x
topology: tpu7x:2x2x1
jax: 0.10.0
libtpu: 0.0.40
codegen_flags: <defaults>
</compile_context>

<pallas_src>
import math

import jax
import jax.numpy as jnp
from jax import lax
from jax.experimental import pallas as pl
from jax.experimental.pallas import tpu as pltpu


def _pairdist_kernel(a_ref, bt_ref, o_ref):
    # a_ref:  (1, TQ, Dp)  augmented query rows  [-2*f_q, ||f_q||^2 + eps, 1]
    # bt_ref: (1, Dp, TK)  augmented key columns [ f_k,    1,  ||f_k||^2 ]^T
    # o_ref:  (1, TQ, TK)  scaled euclidean distances
    sq = jnp.dot(a_ref[0], bt_ref[0], preferred_element_type=jnp.float32)
    # Clamp cancellation negatives (diagonal / near-duplicate rows).
    o_ref[0] = jnp.sqrt(jnp.maximum(sq, 0.0)).astype(o_ref.dtype)


def geometric_distance_module(x, w_proj, b_proj, log_temperature,
                              *, out_dtype=jnp.float32):
    """Forward of GeometricDistanceModule (euclidean, feature_based, trainable).

    x:               [B, S, H] float32
    w_proj:          [H, D]    projection weight (already transposed), D = H//2
    b_proj:          [D]       projection bias
    log_temperature: scalar
    Returns [B, S, S] scaled pairwise distances.
    """
    B, S, H = x.shape
    D = w_proj.shape[1]
    assert w_proj.shape == (H, D)

    x = x.astype(jnp.float32)
    w = w_proj.astype(jnp.float32)
    b = b_proj.astype(jnp.float32).reshape(1, 1, D)
    inv_temp = jnp.exp(-jnp.asarray(log_temperature, jnp.float32))

    # --- hoisted projection (tiny vs the O(B*S^2) output) + inv_temp fold ---
    feats = (jnp.einsum("bsh,hd->bsd", x, w,
                        precision=lax.Precision.HIGHEST) + b) * inv_temp
    rsq = jnp.sum(feats * feats, axis=-1, keepdims=True)           # (B, S, 1)
    ones = jnp.ones_like(rsq)
    eps = 1e-8 * inv_temp * inv_temp   # sqrt epsilon, scaled along with feats

    # Augmented operands: one MXU matmul yields ||f_i - f_j||^2 + eps.
    a_aug = jnp.concatenate([-2.0 * feats, rsq + eps, ones], axis=-1)  # (B,S,Dp)
    bt_aug = jnp.concatenate([feats, ones, rsq], axis=-1)              # (B,S,Dp)
    bt_aug = jnp.transpose(bt_aug, (0, 2, 1))                          # (B,Dp,S)
    Dp = D + 2

    # Large lane-dense output tiles; full-extent blocks when S is small.
    TQ = S if S <= 512 else 512
    TK = S if S <= 1024 else 1024
    grid = (B, pl.cdiv(S, TQ), pl.cdiv(S, TK))

    out = pl.pallas_call(
        _pairdist_kernel,
        out_shape=jax.ShapeDtypeStruct((B, S, S), out_dtype),
        grid_spec=pltpu.PrefetchScalarGridSpec(
            num_scalar_prefetch=0,
            grid=grid,
            in_specs=[
                pl.BlockSpec((1, TQ, Dp), lambda bi, qi, ki: (bi, qi, 0)),
                pl.BlockSpec((1, Dp, TK), lambda bi, qi, ki: (bi, 0, ki)),
            ],
            out_specs=pl.BlockSpec((1, TQ, TK), lambda bi, qi, ki: (bi, qi, ki)),
        ),
        compiler_params=pltpu.CompilerParams(
            # No cross-step dependences (no carried scratch): batch and query
            # axes are megacore-shardable; key axis left 'arbitrary'.
            dimension_semantics=("parallel", "parallel", "arbitrary"),
            # Double-buffered blocks total ~5 MiB at the largest tiles; give
            # explicit headroom (fits every generation's scoped VMEM).
            vmem_limit_bytes=32 * 1024 * 1024,
        ),
    )(a_aug, bt_aug)
    return out


def _reference(x, w_proj, b_proj, log_temperature):
    feats = jnp.einsum("bsh,hd->bsd", x, w_proj,
                       precision=lax.Precision.HIGHEST) + b_proj
    diff = feats[:, :, None, :] - feats[:, None, :, :]
    dist = jnp.sqrt(jnp.sum(diff * diff, axis=-1) + 1e-8)
    return dist / jnp.exp(log_temperature)


if __name__ == "__main__":
    # Module hyperparameters (GeometricDistanceModule defaults).
    hidden_dim = 32
    temperature = 1.0
    B, S, H = 2, 8, hidden_dim
    D = hidden_dim // 2

    key = jax.random.PRNGKey(0)
    k_x, k_w = jax.random.split(key)

    # Input [batch, seq, hidden].
    x = jax.random.normal(k_x, (B, S, H), dtype=jnp.float32)

    # distance_projection = nn.Linear(hidden_dim, hidden_dim // 2):
    # xavier_uniform weight, zero bias, stored transposed as (H, D).
    bound = math.sqrt(6.0 / (H + D))
    w_proj = jax.random.uniform(k_w, (H, D), minval=-bound, maxval=bound,
                                dtype=jnp.float32)
    b_proj = jnp.zeros((D,), dtype=jnp.float32)
    log_temperature = jnp.float32(math.log(temperature))

    out = geometric_distance_module(x, w_proj, b_proj, log_temperature)
    out = jax.block_until_ready(out)
    ref = _reference(x, w_proj, b_proj, log_temperature)

    assert out.shape == (B, S, S)
    # Diagonal entries are ~sqrt(1e-8) in the reference but computed via the
    # Gram identity here; f32 cancellation makes them O(1e-3) absolute.  Off
    # the diagonal the two agree to ~1e-6.
    assert jnp.allclose(out, ref, atol=1e-2, rtol=1e-3), "mismatch vs reference"

    print("KERNEL_OK")
</pallas_src>

<mosaic_0001>
module attributes {stable_mosaic.version = 11 : i64} {
  func.func @_pairdist_kernel(%arg0: i32, %arg1: i32, %arg2: i32, %arg3: memref<1x8x18xf32, #tpu.memory_space<vmem>>, %arg4: memref<1x18x8xf32, #tpu.memory_space<vmem>>, %arg5: memref<1x8x8xf32, #tpu.memory_space<vmem>>) attributes {dimension_semantics = [#tpu.dimension_semantics<parallel>, #tpu.dimension_semantics<parallel>, #tpu.dimension_semantics<arbitrary>], iteration_bounds = array<i64: 2, 1, 1>, scalar_prefetch = 0 : i64, scratch_operands = 0 : i64, tpu.core_type = #tpu.core_type<tc>, window_params = [{transform_indices = @transform_0, window_bounds = array<i64: 1, 8, 18>}, {transform_indices = @transform_1, window_bounds = array<i64: 1, 18, 8>}, {transform_indices = @transform_2, window_bounds = array<i64: 1, 8, 8>}]} {
    %c0 = arith.constant 0 : index
    %c0_0 = arith.constant 0 : index
    %c0_1 = arith.constant 0 : index
    %0 = vector.load %arg3[%c0, %c0_0, %c0_1] : memref<1x8x18xf32, #tpu.memory_space<vmem>>, vector<1x8x18xf32>
    %1 = vector.shape_cast %0 : vector<1x8x18xf32> to vector<8x18xf32>
    %c0_2 = arith.constant 0 : index
    %c0_3 = arith.constant 0 : index
    %c0_4 = arith.constant 0 : index
    %2 = vector.load %arg4[%c0_2, %c0_3, %c0_4] : memref<1x18x8xf32, #tpu.memory_space<vmem>>, vector<1x18x8xf32>
    %3 = vector.shape_cast %2 : vector<1x18x8xf32> to vector<18x8xf32>
    %cst = arith.constant dense<0.000000e+00> : vector<8x8xf32>
    %4 = tpu.matmul %1, %3, %cst {dimension_numbers = #tpu.dot_dimension_numbers<[1], [0], [0], [1], [0, 0, 1, 1], [], []>} : vector<8x18xf32>, vector<18x8xf32>, vector<8x8xf32> -> vector<8x8xf32>
    %cst_5 = arith.constant 0.000000e+00 : f32
    %5 = vector.broadcast %cst_5 : f32 to vector<8x8xf32>
    %6 = arith.maximumf %4, %5 : vector<8x8xf32>
    %7 = math.sqrt %6 : vector<8x8xf32>
    %c0_6 = arith.constant 0 : index
    %c0_7 = arith.constant 0 : index
    %c0_8 = arith.constant 0 : index
    %8 = vector.load %arg5[%c0_6, %c0_7, %c0_8] : memref<1x8x8xf32, #tpu.memory_space<vmem>>, vector<1x8x8xf32>
    %9 = vector.shape_cast %8 : vector<1x8x8xf32> to vector<8x8xf32>
    %10 = vector.shape_cast %7 : vector<8x8xf32> to vector<1x8x8xf32>
    tpu.vector_store %arg5[%c0_6, %c0_7, %c0_8], %10 {strides = array<i32>} : memref<1x8x8xf32, #tpu.memory_space<vmem>>, vector<1x8x8xf32>,
    return
  }
  func.func @transform_0(%arg0: i32, %arg1: i32, %arg2: i32) -> (i32, i32, i32) {
    %c0_i32 = arith.constant 0 : i32
    %c0_i32_0 = arith.constant 0 : i32
    return %arg0, %arg1, %c0_i32 : i32, i32, i32
  }
  func.func @transform_1(%arg0: i32, %arg1: i32, %arg2: i32) -> (i32, i32, i32) {
    %c0_i32 = arith.constant 0 : i32
    %c0_i32_0 = arith.constant 0 : i32
    return %arg0, %c0_i32, %arg2 : i32, i32, i32
  }
  func.func @transform_2(%arg0: i32, %arg1: i32, %arg2: i32) -> (i32, i32, i32) {
    %c0_i32 = arith.constant 0 : i32
    return %arg0, %arg1, %arg2 : i32, i32, i32
  }
}

</mosaic_0001>

<llo_original>
// kernel: tpu_custom_call.1
$region0: #{tpu_custom_call.1}
  #allocation0 [shape = 'u32[]', space=smem, size = 0x4, offset = 0x4, fixed_abs, tag = 'smem constant byte address 0x4 - core index']
  #allocation1 [shape = 'u32[144,128]{1,0:T(1,128)}', space=vmem, size = 0x12000, scoped, tag = 'internal scratch']
  %s0 = inlined_call_operand.vmem [shape: f32[2,8,18], index: 0, kind: input, shape index: {}]
  %s1 = inlined_call_operand.vmem [shape: f32[2,18,8], index: 1, kind: input, shape index: {}]
  %s2 = inlined_call_operand.hbm [shape: f32[2,8,8], index: 2, kind: output, shape index: {}]
  %s3 = sld [smem:[#allocation0]]
  $region41: #{tpu_custom_call.1} parent=0
    _
  %s5 = ssub.s32 1, %s3
  %s6 = scalar_select 0, %s5, %s3
  $region1: #{tpu_custom_call.1} parent=0
    #allocation2 [shape = 'u8[8192]{0}', space=vmem, size = 0x2000, scoped, tag = 'output window, operand 0']
    #allocation3 [shape = 's32[2]{0}', space=sflag, size = 0x8, scoped, tag = 'scoped memory for tpu_custom_call.1']
    %7 = vsyncpa [#allocation3], 0
    %s8 = scalar_lea.sflag [#allocation3], 1
    %9 = vsyncpa %s8, 0
    loop: start=0, step=1, limit=4
    $region2: #{tpu_custom_call.1} parent=1 // loop_pre_header
      _
    $region3: #{tpu_custom_call.1} parent=1 // loop_header
      %s11 = sphi 0, %s15
      %p12 = scmp.ge.s32.totalorder %s11, 4
      %s18 = sphi 0, %s37
      %s19 = sphi 0, %s33
      %s20 = sphi 0, %s29
      %s21 = sphi 0, %s18
      %s22 = sphi 0, %s19
      %s23 = sphi 0, %s20
      %s24 = sphi 0, %s21
      %s25 = sphi 0, %s22
      %s26 = sphi 0, %s23
      %s42 = sphi 0, %s44
      %s45 = sphi 0, %s42
      %s46 = sphi 0, %s45
      %s62 = sphi 0, %s46
      %s70 = sphi 0, %s72
      %s73 = sphi 0, %s70
      %s74 = sphi 0, %s73
      %s90 = sphi 0, %s74
      %s100 = sphi 0, %s102
      %s103 = sphi 0, %s100
      %s104 = sphi 0, %s103
      %s120 = sphi 0, %s104
    $region4: #{tpu_custom_call.1} parent=1 // loop_header_branch
      %14 = sbr.rel (%p12) target = $region8
    $region5: #{tpu_custom_call.1} parent=1 // loop_body
      %s16 = ssub.s32 %s11, 1
      %s17 = ssub.s32 %s11, 2
      %s27 = sadd.s32 1, %s20
      %p28 = scmp.ge.s32.totalorder %s27, 1
      %s29 = scalar_select %p28, 0, %s27
      %s30 = sadd.s32 1, %s19
      %s31 = scalar_select %p28, %s30, %s19
      %p32 = scmp.ge.s32.totalorder %s31, 1
      %s33 = scalar_select %p32, 0, %s31
      %s34 = sadd.s32 1, %s18
      %s35 = scalar_select %p32, %s34, %s18
      %p36 = scmp.ge.s32.totalorder %s35, 2
      %s37 = scalar_select %p36, 0, %s35
      %s38 = ssub.s32 %s18, %s37
      %s39 = ssub.s32 %s19, %s33
      %s40 = sor.u32 %s38, %s39
      %p41 = scmp.eq.s32.totalorder %s40, 0
      %s43 = sadd.s32 %s42, 1
      %s44 = scalar_select %p41, %s42, %s43
      %p47 = pneg %p41
      %p48 = scmp.eq.s32.totalorder %s11, 1
      %p49 = por %p47, %p48
      %p50 = scmp.ne.s32.totalorder %s42, %s45
      %p51 = scmp.eq.s32.totalorder %s11, 0
      %p52 = por %p50, %p51
      %p53 = scmp.ne.s32.totalorder %s42, %s45
      %p54 = scmp.eq.s32.totalorder %s16, 1
      %p55 = por %p53, %p54
      %p56 = scmp.ne.s32.totalorder %s45, %s46
      %p57 = scmp.eq.s32.totalorder %s16, 0
      %p58 = por %p56, %p57
      %p59 = scmp.ne.s32.totalorder %s45, %s46
      %p60 = scmp.eq.s32.totalorder %s17, 1
      %p61 = por %p59, %p60
      %p63 = scmp.ne.s32.totalorder %s46, %s62
      %p64 = scmp.eq.s32.totalorder %s17, 0
      %p65 = por %p63, %p64
      %s66 = ssub.s32 %s18, %s37
      %s67 = ssub.s32 %s20, %s29
      %s68 = sor.u32 %s66, %s67
      %p69 = scmp.eq.s32.totalorder %s68, 0
      %s71 = sadd.s32 %s70, 1
      %s72 = scalar_select %p69, %s70, %s71
      %p75 = pneg %p69
      %p76 = scmp.eq.s32.totalorder %s11, 1
      %p77 = por %p75, %p76
      %p78 = scmp.ne.s32.totalorder %s70, %s73
      %p79 = scmp.eq.s32.totalorder %s11, 0
      %p80 = por %p78, %p79
      %p81 = scmp.ne.s32.totalorder %s70, %s73
      %p82 = scmp.eq.s32.totalorder %s16, 1
      %p83 = por %p81, %p82
      %p84 = scmp.ne.s32.totalorder %s73, %s74
      %p85 = scmp.eq.s32.totalorder %s16, 0
      %p86 = por %p84, %p85
      %p87 = scmp.ne.s32.totalorder %s73, %s74
      %p88 = scmp.eq.s32.totalorder %s17, 1
      %p89 = por %p87, %p88
      %p91 = scmp.ne.s32.totalorder %s74, %s90
      %p92 = scmp.eq.s32.totalorder %s17, 0
      %p93 = por %p91, %p92
      %s94 = ssub.s32 %s18, %s37
      %s95 = ssub.s32 %s19, %s33
      %s96 = sor.u32 %s94, %s95
      %s97 = ssub.s32 %s20, %s29
      %s98 = sor.u32 %s96, %s97
      %p99 = scmp.eq.s32.totalorder %s98, 0
      %s101 = sadd.s32 %s100, 1
      %s102 = scalar_select %p99, %s100, %s101
      %p105 = pneg %p99
      %p106 = scmp.eq.s32.totalorder %s11, 1
      %p107 = por %p105, %p106
      %p108 = scmp.ne.s32.totalorder %s100, %s103
      %p109 = scmp.eq.s32.totalorder %s11, 0
      %p110 = por %p108, %p109
      %p111 = scmp.ne.s32.totalorder %s100, %s103
      %p112 = scmp.eq.s32.totalorder %s16, 1
      %p113 = por %p111, %p112
      %p114 = scmp.ne.s32.totalorder %s103, %s104
      %p115 = scmp.eq.s32.totalorder %s16, 0
      %p116 = por %p114, %p115
      %p117 = scmp.ne.s32.totalorder %s103, %s104
      %p118 = scmp.eq.s32.totalorder %s17, 1
      %p119 = por %p117, %p118
      %p121 = scmp.ne.s32.totalorder %s104, %s120
      %p122 = scmp.eq.s32.totalorder %s17, 0
      %p123 = por %p121, %p122
      %p124 = scmp.le.s32.totalorder 1, %s11
      %p125 = scmp.lt.s32.totalorder %s11, 3
      %p126 = pnand %p124, %p125
      %p127 = pneg %p126
      // Predicated region
      $region9: #{tpu_custom_call.1} parent=5 // pred_check
        _
      $region10: #{tpu_custom_call.1} parent=5 // pred_check_branch
        %129 = sbr.rel (%p126) target = $region12
      $region11: #{tpu_custom_call.1} parent=5 // pred_region
        %s130 = ssub.s32 %s11, 1
      $region12: #{tpu_custom_call.1} parent=5 // pred_fallthru
        _
      %p131 = scmp.lt.s32.totalorder %s11, 2
      // Predicated region
      $region13: #{tpu_custom_call.1} parent=5 // pred_check
        %p132 = pneg %p131
      $region14: #{tpu_custom_call.1} parent=5 // pred_check_branch
        %134 = sbr.rel (%p132) target = $region16
      $region15: #{tpu_custom_call.1} parent=5 // pred_region
        // Predicated region
        $region17: #{tpu_custom_call.1} parent=15 // pred_check
          %p135 = pneg %p52
        $region18: #{tpu_custom_call.1} parent=15 // pred_check_branch
          %137 = sbr.rel (%p135) target = $region20
        $region19: #{tpu_custom_call.1} parent=15 // pred_region
          %p138 = scmp.lt.s32.totalorder %s18, 1
          %s139 = scalar_select %p138, %s18, 1
          %p140 = scmp.lt.s32.totalorder %s19, 0
          %s141 = scalar_select %p140, %s19, 0
          %s142 = sadd.s32 %s141, %s139
          %s143 = smul.addr %s142, 8
          %s144 = scalar_lea.vmem %s0, %s143
        $region20: #{tpu_custom_call.1} parent=15 // pred_fallthru
          _
        // Predicated region
        $region21: #{tpu_custom_call.1} parent=15 // pred_check
          %p145 = pneg %p80
        $region22: #{tpu_custom_call.1} parent=15 // pred_check_branch
          %147 = sbr.rel (%p145) target = $region24
        $region23: #{tpu_custom_call.1} parent=15 // pred_region
          %p148 = scmp.lt.s32.totalorder %s18, 1
          %s149 = scalar_select %p148, %s18, 1
          %p150 = scmp.lt.s32.totalorder %s20, 0
          %s151 = scalar_select %p150, %s20, 0
          %s152 = smul.addr %s149, 3
          %s153 = sadd.s32 %s151, %s152
          %s154 = smul.addr %s153, 8
          %s155 = scalar_lea.vmem %s1, %s154
        $region24: #{tpu_custom_call.1} parent=15 // pred_fallthru
          _
      $region16: #{tpu_custom_call.1} parent=5 // pred_fallthru
        _
      %p156 = scmp.le.s32.totalorder 1, %s11
      %p157 = scmp.lt.s32.totalorder %s11, 3
      %p158 = pnand %p156, %p157
      %p159 = pneg %p158
      // Predicated region
      $region25: #{tpu_custom_call.1} parent=5 // pred_check
        _
      $region26: #{tpu_custom_call.1} parent=5 // pred_check_branch
        %161 = sbr.rel (%p158) target = $region28
      $region27: #{tpu_custom_call.1} parent=5 // pred_region
        %s162 = ssub.s32 %s11, 1
        %p163 = scmp.lt.s32.totalorder %s21, 1
        %s164 = scalar_select %p163, %s21, 1
        %p165 = scmp.lt.s32.totalorder %s22, 0
        %s166 = scalar_select %p165, %s22, 0
        %s167 = sadd.s32 %s166, %s164
        %s168 = smul.addr %s167, 8
        %s169 = scalar_lea.vmem %s0, %s168
        %p170 = pneg %p58
        %p171 = pneg %p55
        %p172 = scmp.lt.s32.totalorder %s21, 1
        %s173 = scalar_select %p172, %s21, 1
        %p174 = scmp.lt.s32.totalorder %s23, 0
        %s175 = scalar_select %p174, %s23, 0
        %s176 = smul.addr %s173, 3
        %s177 = sadd.s32 %s175, %s176
        %s178 = smul.addr %s177, 8
        %s179 = scalar_lea.vmem %s1, %s178
        %p180 = pneg %p86
        %p181 = pneg %p83
        %p182 = pneg %p116
        %p183 = pneg %p113
        %s184 = sand.u32 %s103, 1
        %s185 = scalar_lea.sflag [#allocation3], %s184
        %s186 = sand.u32 %s103, 1
        %s187 = smul.addr %s186, 8
        %s188 = scalar_lea.vmem [#allocation2], %s187
        %p189 = scmp.lt.s32.totalorder %s21, 1
        %s190 = scalar_select %p189, %s21, 1
        %p191 = scmp.lt.s32.totalorder %s22, 0
        %s192 = scalar_select %p191, %s22, 0
        %s193 = sadd.s32 %s192, %s190
        %s194 = smul.addr %s193, 8
        %s195 = scalar_lea.vmem %s0, %s194
        %p196 = scmp.lt.s32.totalorder %s21, 1
        %s197 = scalar_select %p196, %s21, 1
        %p198 = scmp.lt.s32.totalorder %s23, 0
        %s199 = scalar_select %p198, %s23, 0
        %s200 = smul.addr %s197, 3
        %s201 = sadd.s32 %s199, %s200
        %s202 = smul.addr %s201, 8
        %s203 = scalar_lea.vmem %s1, %s202
        %v204 = vld [vmem:[%s195] sm:$0xff]
        %v205 = vld [vmem:[%s203] sm:$0xff]
        %v206 = vld [vmem:[%s203 + $0x8] sm:$0xff]
        %v207 = vld [vmem:[%s203 + $0x10] sm:$0x3]
        %vm208 = vcmask 146432
        %v210 = vsel %vm208, %v204, 0
        %vm212 = vcmask 1041408
        %v214 = vsel %vm212, %v207, 0
        %216 = vmatprep.subr.mxu0 0.0
        %217 = vmatpush1.msra.mxu0 %v205
        %218 = vmatprep.subr.mxu0 0.0
        %219 = vmatpush1.msra.mxu0 %v206
        %220 = vmatprep.subr.mxu0 0.0
        %221 = vmatpush1.msra.mxu0 %v214
        %222 = vmatprep.subr.mxu0 0.0
        %223 = vmatpush1.msra.mxu0 0.0
        %224 = vmatprep.subr.mxu0 0.0
        %225 = vmatpush1.msra.mxu0 0.0
        %226 = vmatprep.subr.mxu0 0.0
        %227 = vmatpush1.msra.mxu0 0.0
        %228 = vmatprep.subr.mxu0 0.0
        %229 = vmatpush1.msra.mxu0 0.0
        %230 = vmatprep.subr.mxu0 0.0
        %231 = vmatpush1.msra.mxu0 0.0
        %232 = vmatprep.subr.mxu0 0.0
        %233 = vmatpush1.msra.mxu0 0.0
        %234 = vmatprep.subr.mxu0 0.0
        %235 = vmatpush1.msra.mxu0 0.0
        %236 = vmatprep.subr.mxu0 0.0
        %237 = vmatpush1.msra.mxu0 0.0
        %238 = vmatprep.subr.mxu0 0.0
        %239 = vmatpush1.msra.mxu0 0.0
        %240 = vmatprep.subr.mxu0 0.0
        %241 = vmatpush1.msra.mxu0 0.0
        %242 = vmatprep.subr.mxu0 0.0
        %243 = vmatpush1.msra.mxu0 0.0
        %244 = vmatprep.subr.mxu0 0.0
        %245 = vmatpush1.msra.mxu0 0.0
        %246 = vmatprep.subr.mxu0 0.0
        %247 = vmatpush1.msra.mxu0 0.0
        %248 = vmatprep.subr.mxu0 0.0
        %249 = vmatpush1.msra.mxu0 0.0
        %250 = vmatprep.subr.mxu0 0.0
        %251 = vmatpush1.msra.mxu0 0.0
        %252 = vmatprep.subr.mxu0 0.0
        %253 = vmatpush1.msra.mxu0 0.0
        %254 = vmatprep.subr.mxu0 0.0
        %255 = vmatpush1.msra.mxu0 0.0
        %256 = vmatprep.subr.mxu0 0.0
        %257 = vmatpush1.msra.mxu0 0.0
        %258 = vmatprep.subr.mxu0 0.0
        %259 = vmatpush1.msra.mxu0 0.0
        %260 = vmatprep.subr.mxu0 0.0
        %261 = vmatpush1.msra.mxu0 0.0
        %262 = vmatprep.subr.mxu0 0.0
        %263 = vmatpush1.msra.mxu0 0.0
        %264 = vmatprep.subr.mxu0 0.0
        %265 = vmatpush1.msra.mxu0 0.0
        %266 = vmatprep.subr.mxu0 0.0
        %267 = vmatpush1.msra.mxu0 0.0
        %268 = vmatprep.subr.mxu0 0.0
        %269 = vmatpush1.msra.mxu0 0.0
        %270 = vmatprep.subr.mxu0 0.0
        %271 = vmatpush1.msra.mxu0 0.0
        %272 = vmatprep.subr.mxu0 0.0
        %273 = vmatpush1.msra.mxu0 0.0
        %274 = vmatprep.subr.mxu0 0.0
        %275 = vmatpush1.msra.mxu0 0.0
        %276 = vmatprep.subr.mxu0 0.0
        %277 = vmatpush1.msra.mxu0 0.0
        %278 = vmatprep.subr.mxu0 0.0
        %279 = vmatpush1.msra.mxu0 0.0
        %280 = vmatprep.mubr.f32.mxu0 0.0
        %281 = vmatmul.mubr.f32.gmra.mrb[0].mxu0 %v210
        %v282 = vpop.f32.mrb[0].mxu0
        %v283 = vadd.f32 0.0, %v282
        %v284 = vpop.f32.mrb[0].mxu0
        %285 = vdwg.mxu0
        %v286 = vmax.f32 %v283, 0.0
        %v287 = vrsqrt.pop %v286
        %v288 = vmul.f32 %v286, %v287
        %vm289 = vcmp.eq.f32.partialorder %v286, inf
        %v290 = vsel %vm289, %v286, %v288
        %vm291 = vcmp.eq.f32.partialorder %v286, 0.0
        %v292 = vand.u32 %v286, 2147483648
        %v293 = vsel %vm291, %v292, %v290
        %vm294 = vcmask 64512
        %295 = vst.msk [vmem:[%s188] sm:$0xff] %vm294, %v293
        %s296 = sand.u32 %s103, 1
        %s297 = scalar_lea.sflag [#allocation3], %s296
        %s298 = sand.u32 %s103, 1
        %s299 = smul.addr %s298, 8
        %s300 = scalar_lea.vmem [#allocation2], %s299
        // Predicated region
        $region29: #{tpu_custom_call.1} parent=27 // pred_check
          %p301 = pneg %p113
        $region30: #{tpu_custom_call.1} parent=27 // pred_check_branch
          %303 = sbr.rel (%p301) target = $region32
        $region31: #{tpu_custom_call.1} parent=27 // pred_region
          %s305 = ssub.s32 128, 128
          %306 = vsyncadd %s297, %s305
          %s307 = sadd.s32 %s23, %s22
          %s308 = sadd.s32 %s307, %s21
          %s309 = smul.addr %s308, 128
          %s310 = scalar_lea.hbm %s2, %s309
          %s312 = sshll.u32 %s300, 4
          %s313 = int_to_ptr.vmem [resolvable:$true] %s312
          %315 = dma.vmem_to_hbm [thread:$0]  %s313, 128, %s310, %s297
        $region32: #{tpu_custom_call.1} parent=27 // pred_fallthru
          _
      $region28: #{tpu_custom_call.1} parent=5 // pred_fallthru
        _
      %p316 = scmp.le.s32.totalorder 2, %s11
      // Predicated region
      $region33: #{tpu_custom_call.1} parent=5 // pred_check
        %p317 = pneg %p316
      $region34: #{tpu_custom_call.1} parent=5 // pred_check_branch
        %319 = sbr.rel (%p317) target = $region36
      $region35: #{tpu_custom_call.1} parent=5 // pred_region
        %s320 = ssub.s32 %s11, 2
        // Predicated region
        $region37: #{tpu_custom_call.1} parent=35 // pred_check
          %p321 = pneg %p119
        $region38: #{tpu_custom_call.1} parent=35 // pred_check_branch
          %323 = sbr.rel (%p321) target = $region40
        $region39: #{tpu_custom_call.1} parent=35 // pred_region
          %s324 = sand.u32 %s104, 1
          %s325 = scalar_lea.sflag [#allocation3], %s324
          %s326 = sand.u32 %s104, 1
          %s327 = smul.addr %s326, 8
          %s328 = scalar_lea.vmem [#allocation2], %s327
          %329 = dma.done %s325, 128
        $region40: #{tpu_custom_call.1} parent=35 // pred_fallthru
          _
      $region36: #{tpu_custom_call.1} parent=5 // pred_fallthru
        _
    $region6: #{tpu_custom_call.1} parent=1 // loop_footer
      %s15 = sadd.s32 1, %s11
    $region7: #{tpu_custom_call.1} parent=1 // loop_footer_branch
      %10 = sbr.rel target = $region3
    $region8: #{tpu_custom_call.1} parent=1 // loop_exit
      _
    %330 = vsyncpa [#allocation3], 1
    %s331 = scalar_lea.sflag [#allocation3], 1
    %332 = vsyncpa %s331, 1

</llo_original>
